<compile_context>
chip_gen: v7x
topology: tpu7x:2x2x1
jax: 0.10.0
libtpu: 0.0.40
codegen_flags: <defaults>
</compile_context>

<pallas_src>
import functools
import math

import jax
import jax.numpy as jnp
from jax.experimental import pallas as pl
from jax.experimental.pallas import tpu as pltpu


def _round_up(v, m):
    return ((v + m - 1) // m) * m


def _causal_conv_kernel(prev_ref, cur_ref, w_ref, b_ref, o_ref, *,
                        kernel_size, dilation, padding, tile_l):
    """One (batch, time-tile) grid step.

    prev_ref : (1, Cp, TILE_L)       previous time tile of x (halo source)
    cur_ref  : (1, Cp, TILE_L)       current time tile of x
    w_ref    : (C_out, K*Cp)         fused tap weights
    b_ref    : (C_out, 1)            bias (f32)
    o_ref    : (1, C_out, TILE_L)    output tile (NCL layout, lane-dense)
    """
    j = pl.program_id(1)

    prev = prev_ref[0]                                   # (Cp, TL)
    cur = cur_ref[0]                                     # (Cp, TL)
    # Causal left padding: at the first time tile the halo is zeros.
    prev = jnp.where(j == 0, jnp.zeros_like(prev), prev)

    # prev || cur along time (lane-aligned concat: offset is a multiple of 128).
    xt = jnp.concatenate([prev, cur], axis=-1)           # (Cp, 2*TL)

    # Shifted windows for each tap; static slice bounds.
    wins = []
    for k in range(kernel_size):
        s = padding - k * dilation                       # 0 <= s <= P <= TILE_L
        wins.append(xt[:, tile_l - s: 2 * tile_l - s])   # (Cp, TL)
    # Stack taps along the contraction dim (Cp is a multiple of 8 -> aligned).
    x_taps = jnp.concatenate(wins, axis=0)               # (K*Cp, TL)

    # Single fused MXU matmul, f32 accumulation; bias folded into the epilogue.
    acc = jnp.dot(w_ref[...], x_taps, preferred_element_type=jnp.float32)
    acc = acc + b_ref[...]                               # (C_out, 1) broadcast over lanes
    o_ref[0] = acc.astype(o_ref.dtype)


def dilated_causal_conv1d(x, weight, bias, *, dilation=1, tile_l=512,
                          compute_dtype=None):
    """Forward pass matching DilatedCausalConv1d (eval mode).

    Args:
      x:      [B, C_in, L]        (PyTorch NCL layout)
      weight: [C_out, C_in, K]    (PyTorch Conv1d weight layout)
      bias:   [C_out]
    Returns:
      [B, C_out, L]
    """
    B, C_in, L = x.shape
    C_out, C_in_w, K = weight.shape
    assert C_in == C_in_w
    P = (K - 1) * dilation

    # Time tile: multiple of 128 lanes, at least P (halo must fit in one
    # previous tile), no larger than the (rounded-up) sequence length.
    tl = min(int(tile_l), _round_up(max(L, 1), 128))
    tl = max(tl, _round_up(max(P, 1), 128))
    tl = _round_up(tl, 128)

    Lr = _round_up(L, tl)                 # right-pad time to a tile multiple
    C_in_p = _round_up(C_in, 8)           # pad channels so sublane concat aligns

    x_in = x
    if (Lr != L) or (C_in_p != C_in):
        x_in = jnp.pad(x, ((0, 0), (0, C_in_p - C_in), (0, Lr - L)))

    # Fused weight: w2[o, k*Cp + c] = weight[o, c, k]  (zero rows for padded c).
    w_kc = jnp.transpose(weight, (0, 2, 1))              # [C_out, K, C_in]
    if C_in_p != C_in:
        w_kc = jnp.pad(w_kc, ((0, 0), (0, 0), (0, C_in_p - C_in)))
    w2 = w_kc.reshape(C_out, K * C_in_p)                 # [C_out, K*Cp]
    b2 = bias.astype(jnp.float32).reshape(C_out, 1)      # [C_out, 1]

    if compute_dtype is not None:
        x_in = x_in.astype(compute_dtype)
        w2 = w2.astype(compute_dtype)

    n_t = Lr // tl
    kernel = functools.partial(
        _causal_conv_kernel,
        kernel_size=K, dilation=dilation, padding=P, tile_l=tl,
    )

    out = pl.pallas_call(
        kernel,
        out_shape=jax.ShapeDtypeStruct((B, C_out, Lr), x.dtype),
        grid_spec=pltpu.PrefetchScalarGridSpec(
            num_scalar_prefetch=0,
            grid=(B, n_t),
            in_specs=[
                # Previous time tile of x (halo source); clamped at j == 0.
                pl.BlockSpec((1, C_in_p, tl),
                             lambda b, j: (b, 0, jnp.maximum(j - 1, 0))),
                # Current time tile of x.
                pl.BlockSpec((1, C_in_p, tl), lambda b, j: (b, 0, j)),
                # Fused weights / bias: resident, same block every step.
                pl.BlockSpec((C_out, K * C_in_p), lambda b, j: (0, 0)),
                pl.BlockSpec((C_out, 1), lambda b, j: (0, 0)),
            ],
            out_specs=pl.BlockSpec((1, C_out, tl), lambda b, j: (b, 0, j)),
        ),
        compiler_params=pltpu.CompilerParams(
            dimension_semantics=("parallel", "parallel"),
            vmem_limit_bytes=48 * 1024 * 1024,
        ),
    )(x_in, x_in, w2, b2)

    if Lr != L:
        out = out[:, :, :L]
    return out


def _reference_conv(x, weight, bias, dilation):
    """Pure-JAX reference (lax conv) for correctness checking."""
    K = weight.shape[-1]
    P = (K - 1) * dilation
    out = jax.lax.conv_general_dilated(
        x, weight,
        window_strides=(1,),
        padding=[(P, P)],
        rhs_dilation=(dilation,),
        dimension_numbers=("NCH", "OIH", "NCH"),
    )
    out = out + bias[None, :, None]
    if P > 0:
        out = out[:, :, :-P]
    return out


if __name__ == "__main__":
    # Small shapes consistent with the module's forward: x is [B, C, L].
    B, C_in, C_out, L = 2, 4, 4, 16
    K, dilation = 3, 2

    key = jax.random.PRNGKey(0)
    kx, kw, kb = jax.random.split(key, 3)

    x = jax.random.normal(kx, (B, C_in, L), dtype=jnp.float32)

    # Deterministic init mimicking PyTorch Conv1d default (uniform +/- 1/sqrt(fan_in)).
    fan_in = C_in * K
    bound = 1.0 / math.sqrt(fan_in)
    weight = jax.random.uniform(kw, (C_out, C_in, K), minval=-bound, maxval=bound,
                                dtype=jnp.float32)
    bias = jax.random.uniform(kb, (C_out,), minval=-bound, maxval=bound,
                              dtype=jnp.float32)

    out = dilated_causal_conv1d(x, weight, bias, dilation=dilation)
    out = jax.block_until_ready(out)

    ref = _reference_conv(x, weight, bias, dilation)
    assert out.shape == (B, C_out, L), out.shape
    err = float(jnp.max(jnp.abs(out - ref)))
    assert jnp.allclose(out, ref, atol=1e-5, rtol=1e-5), err

    print("KERNEL_OK")
</pallas_src>

<mosaic_0001>
module attributes {stable_mosaic.version = 11 : i64} {
  func.func @_causal_conv_kernel(%arg0: i32, %arg1: i32, %arg2: memref<1x8x128xf32, #tpu.memory_space<vmem>>, %arg3: memref<1x8x128xf32, #tpu.memory_space<vmem>>, %arg4: memref<4x24xf32, #tpu.memory_space<vmem>>, %arg5: memref<4x1xf32, #tpu.memory_space<vmem>>, %arg6: memref<1x4x128xf32, #tpu.memory_space<vmem>>) attributes {dimension_semantics = [#tpu.dimension_semantics<parallel>, #tpu.dimension_semantics<parallel>], iteration_bounds = array<i64: 2, 1>, scalar_prefetch = 0 : i64, scratch_operands = 0 : i64, tpu.core_type = #tpu.core_type<tc>, window_params = [{transform_indices = @transform_0, window_bounds = array<i64: 1, 8, 128>}, {transform_indices = @transform_1, window_bounds = array<i64: 1, 8, 128>}, {pipeline_mode = #tpu.pipeline_mode<synchronous>, transform_indices = @transform_2, window_bounds = array<i64: 4, 24>}, {pipeline_mode = #tpu.pipeline_mode<synchronous>, transform_indices = @transform_3, window_bounds = array<i64: 4, 1>}, {transform_indices = @transform_4, window_bounds = array<i64: 1, 4, 128>}]} {
    %c0 = arith.constant 0 : index
    %c0_0 = arith.constant 0 : index
    %c0_1 = arith.constant 0 : index
    %0 = vector.load %arg2[%c0, %c0_0, %c0_1] : memref<1x8x128xf32, #tpu.memory_space<vmem>>, vector<1x8x128xf32>
    %1 = vector.shape_cast %0 : vector<1x8x128xf32> to vector<8x128xf32>
    %c0_2 = arith.constant 0 : index
    %c0_3 = arith.constant 0 : index
    %c0_4 = arith.constant 0 : index
    %2 = vector.load %arg3[%c0_2, %c0_3, %c0_4] : memref<1x8x128xf32, #tpu.memory_space<vmem>>, vector<1x8x128xf32>
    %3 = vector.shape_cast %2 : vector<1x8x128xf32> to vector<8x128xf32>
    %c0_i32 = arith.constant 0 : i32
    %4 = arith.cmpi eq, %arg1, %c0_i32 : i32
    %cst = arith.constant 0.000000e+00 : f32
    %5 = vector.broadcast %cst : f32 to vector<8x128xf32>
    %6 = arith.select %4, %5, %1 : vector<8x128xf32>
    %7 = tpu.concatenate %6, %3 in 1 : vector<8x128xf32>, vector<8x128xf32> -> vector<8x256xf32>
    %8 = vector.extract_strided_slice %7 {offsets = [0, 124], sizes = [8, 128], strides = [1, 1]} : vector<8x256xf32> to vector<8x128xf32>
    %9 = vector.extract_strided_slice %7 {offsets = [0, 126], sizes = [8, 128], strides = [1, 1]} : vector<8x256xf32> to vector<8x128xf32>
    %10 = vector.extract_strided_slice %7 {offsets = [0, 128], sizes = [8, 128], strides = [1, 1]} : vector<8x256xf32> to vector<8x128xf32>
    %11 = tpu.concatenate %8, %9, %10 in 0 : vector<8x128xf32>, vector<8x128xf32>, vector<8x128xf32> -> vector<24x128xf32>
    %c0_5 = arith.constant 0 : index
    %c0_6 = arith.constant 0 : index
    %12 = vector.load %arg4[%c0_5, %c0_6] : memref<4x24xf32, #tpu.memory_space<vmem>>, vector<4x24xf32>
    %cst_7 = arith.constant dense<0.000000e+00> : vector<4x128xf32>
    %13 = tpu.matmul %12, %11, %cst_7 {dimension_numbers = #tpu.dot_dimension_numbers<[1], [0], [0], [1], [0, 0, 1, 1], [], []>} : vector<4x24xf32>, vector<24x128xf32>, vector<4x128xf32> -> vector<4x128xf32>
    %c0_8 = arith.constant 0 : index
    %c0_9 = arith.constant 0 : index
    %14 = vector.load %arg5[%c0_8, %c0_9] : memref<4x1xf32, #tpu.memory_space<vmem>>, vector<4x1xf32>
    %15 = vector.broadcast %14 : vector<4x1xf32> to vector<4x128xf32>
    %16 = arith.addf %13, %15 : vector<4x128xf32>
    %c0_10 = arith.constant 0 : index
    %c0_11 = arith.constant 0 : index
    %c0_12 = arith.constant 0 : index
    %17 = vector.load %arg6[%c0_10, %c0_11, %c0_12] : memref<1x4x128xf32, #tpu.memory_space<vmem>>, vector<1x4x128xf32>
    %18 = vector.shape_cast %17 : vector<1x4x128xf32> to vector<4x128xf32>
    %19 = vector.shape_cast %16 : vector<4x128xf32> to vector<1x4x128xf32>
    tpu.vector_store %arg6[%c0_10, %c0_11, %c0_12], %19 {strides = array<i32>} : memref<1x4x128xf32, #tpu.memory_space<vmem>>, vector<1x4x128xf32>,
    return
  }
  func.func @transform_0(%arg0: i32, %arg1: i32) -> (i32, i32, i32) {
    %c1_i32 = arith.constant 1 : i32
    %0 = arith.subi %arg1, %c1_i32 : i32
    %c0_i32 = arith.constant 0 : i32
    %1 = arith.maxsi %0, %c0_i32 : i32
    %c0_i32_0 = arith.constant 0 : i32
    %c0_i32_1 = arith.constant 0 : i32
    return %arg0, %c0_i32_0, %1 : i32, i32, i32
  }
  func.func @transform_1(%arg0: i32, %arg1: i32) -> (i32, i32, i32) {
    %c0_i32 = arith.constant 0 : i32
    %c0_i32_0 = arith.constant 0 : i32
    return %arg0, %c0_i32, %arg1 : i32, i32, i32
  }
  func.func @transform_2(%arg0: i32, %arg1: i32) -> (i32, i32) {
    %c0_i32 = arith.constant 0 : i32
    %c0_i32_0 = arith.constant 0 : i32
    %c0_i32_1 = arith.constant 0 : i32
    return %c0_i32, %c0_i32_0 : i32, i32
  }
  func.func @transform_3(%arg0: i32, %arg1: i32) -> (i32, i32) {
    %c0_i32 = arith.constant 0 : i32
    %c0_i32_0 = arith.constant 0 : i32
    %c0_i32_1 = arith.constant 0 : i32
    return %c0_i32, %c0_i32_0 : i32, i32
  }
  func.func @transform_4(%arg0: i32, %arg1: i32) -> (i32, i32, i32) {
    %c0_i32 = arith.constant 0 : i32
    %c0_i32_0 = arith.constant 0 : i32
    return %arg0, %c0_i32, %arg1 : i32, i32, i32
  }
}

</mosaic_0001>

<llo_original>
// kernel: tpu_custom_call.1
$region0: #{tpu_custom_call.1}
  #allocation0 [shape = 'u32[]', space=smem, size = 0x4, offset = 0x4, fixed_abs, tag = 'smem constant byte address 0x4 - core index']
  #allocation1 [shape = 'u32[144,128]{1,0:T(1,128)}', space=vmem, size = 0x12000, scoped, tag = 'internal scratch']
  %s0 = inlined_call_operand.hbm [shape: f32[2,8,128], index: 0, kind: input, shape index: {}]
  %s1 = inlined_call_operand.hbm [shape: f32[2,8,128], index: 1, kind: input, shape index: {}]
  %s2 = inlined_call_operand.vmem [shape: f32[4,24], index: 2, kind: input, shape index: {}]
  %s3 = inlined_call_operand.vmem [shape: f32[4,1], index: 3, kind: input, shape index: {}]
  %s4 = inlined_call_operand.hbm [shape: f32[2,4,128], index: 4, kind: output, shape index: {}]
  %s5 = sld [smem:[#allocation0]]
  $region57: #{tpu_custom_call.1} parent=0
    _
  %s7 = ssub.s32 1, %s5
  %s8 = scalar_select 0, %s7, %s5
  $region1: #{tpu_custom_call.1} parent=0
    #allocation2 [shape = 'u8[8192]{0}', space=vmem, size = 0x2000, scoped, tag = 'input window, operand 0']
    #allocation3 [shape = 's32[2]{0}', space=sflag, size = 0x8, scoped, tag = 'scoped memory for tpu_custom_call.1']
    #allocation4 [shape = 's32[2]{0}', space=sflag, size = 0x8, scoped, tag = 'scoped memory for tpu_custom_call.1']
    #allocation5 [shape = 'u8[8192]{0}', space=vmem, size = 0x2000, scoped, tag = 'input window, operand 1']
    #allocation6 [shape = 's32[2]{0}', space=sflag, size = 0x8, scoped, tag = 'scoped memory for tpu_custom_call.1']
    #allocation7 [shape = 'u8[4096]{0}', space=vmem, size = 0x1000, scoped, tag = 'output window, operand 0']
    %9 = vsyncpa [#allocation3], 0
    %s10 = scalar_lea.sflag [#allocation3], 1
    %11 = vsyncpa %s10, 0
    %12 = vsyncpa [#allocation6], 0
    %s13 = scalar_lea.sflag [#allocation6], 1
    %14 = vsyncpa %s13, 0
    %15 = vsyncpa [#allocation4], 0
    %s16 = scalar_lea.sflag [#allocation4], 1
    %17 = vsyncpa %s16, 0
    loop: start=0, step=1, limit=4
    $region2: #{tpu_custom_call.1} parent=1 // loop_pre_header
      _
    $region3: #{tpu_custom_call.1} parent=1 // loop_header
      %s19 = sphi 0, %s23
      %p20 = scmp.ge.s32.totalorder %s19, 4
      %s26 = sphi 0, %s38
      %s27 = sphi 0, %s34
      %s28 = sphi 0, %s26
      %s29 = sphi 0, %s27
      %s30 = sphi 0, %s28
      %s31 = sphi 0, %s29
      %s49 = sphi 0, %s51
      %s52 = sphi 0, %s49
      %s53 = sphi 0, %s52
      %s69 = sphi 0, %s53
      %s77 = sphi 0, %s79
      %s80 = sphi 0, %s77
      %s81 = sphi 0, %s80
      %s97 = sphi 0, %s81
      %s101 = sphi 0, %s101
      %s103 = sphi 0, %s101
      %s104 = sphi 0, %s103
      %s118 = sphi 0, %s104
      %s122 = sphi 0, %s122
      %s124 = sphi 0, %s122
      %s125 = sphi 0, %s124
      %s139 = sphi 0, %s125
      %s147 = sphi 0, %s149
      %s150 = sphi 0, %s147
      %s151 = sphi 0, %s150
      %s167 = sphi 0, %s151
    $region4: #{tpu_custom_call.1} parent=1 // loop_header_branch
      %22 = sbr.rel (%p20) target = $region8
    $region5: #{tpu_custom_call.1} parent=1 // loop_body
      %s24 = ssub.s32 %s19, 1
      %s25 = ssub.s32 %s19, 2
      %s32 = sadd.s32 1, %s27
      %p33 = scmp.ge.s32.totalorder %s32, 1
      %s34 = scalar_select %p33, 0, %s32
      %s35 = sadd.s32 1, %s26
      %s36 = scalar_select %p33, %s35, %s26
      %p37 = scmp.ge.s32.totalorder %s36, 2
      %s38 = scalar_select %p37, 0, %s36
      %s39 = ssub.s32 %s27, 1
      %p40 = scmp.gt.s32.totalorder %s39, 0
      %s41 = scalar_select %p40, %s39, 0
      %s42 = ssub.s32 %s34, 1
      %p43 = scmp.gt.s32.totalorder %s42, 0
      %s44 = scalar_select %p43, %s42, 0
      %s45 = ssub.s32 %s26, %s38
      %s46 = ssub.s32 %s41, %s44
      %s47 = sor.u32 %s45, %s46
      %p48 = scmp.eq.s32.totalorder %s47, 0
      %s50 = sadd.s32 %s49, 1
      %s51 = scalar_select %p48, %s49, %s50
      %p54 = pneg %p48
      %p55 = scmp.eq.s32.totalorder %s19, 1
      %p56 = por %p54, %p55
      %p57 = scmp.ne.s32.totalorder %s49, %s52
      %p58 = scmp.eq.s32.totalorder %s19, 0
      %p59 = por %p57, %p58
      %p60 = scmp.ne.s32.totalorder %s49, %s52
      %p61 = scmp.eq.s32.totalorder %s24, 1
      %p62 = por %p60, %p61
      %p63 = scmp.ne.s32.totalorder %s52, %s53
      %p64 = scmp.eq.s32.totalorder %s24, 0
      %p65 = por %p63, %p64
      %p66 = scmp.ne.s32.totalorder %s52, %s53
      %p67 = scmp.eq.s32.totalorder %s25, 1
      %p68 = por %p66, %p67
      %p70 = scmp.ne.s32.totalorder %s53, %s69
      %p71 = scmp.eq.s32.totalorder %s25, 0
      %p72 = por %p70, %p71
      %s73 = ssub.s32 %s26, %s38
      %s74 = ssub.s32 %s27, %s34
      %s75 = sor.u32 %s73, %s74
      %p76 = scmp.eq.s32.totalorder %s75, 0
      %s78 = sadd.s32 %s77, 1
      %s79 = scalar_select %p76, %s77, %s78
      %p82 = pneg %p76
      %p83 = scmp.eq.s32.totalorder %s19, 1
      %p84 = por %p82, %p83
      %p85 = scmp.ne.s32.totalorder %s77, %s80
      %p86 = scmp.eq.s32.totalorder %s19, 0
      %p87 = por %p85, %p86
      %p88 = scmp.ne.s32.totalorder %s77, %s80
      %p89 = scmp.eq.s32.totalorder %s24, 1
      %p90 = por %p88, %p89
      %p91 = scmp.ne.s32.totalorder %s80, %s81
      %p92 = scmp.eq.s32.totalorder %s24, 0
      %p93 = por %p91, %p92
      %p94 = scmp.ne.s32.totalorder %s80, %s81
      %p95 = scmp.eq.s32.totalorder %s25, 1
      %p96 = por %p94, %p95
      %p98 = scmp.ne.s32.totalorder %s81, %s97
      %p99 = scmp.eq.s32.totalorder %s25, 0
      %p100 = por %p98, %p99
      %s102 = sadd.s32 %s101, 1
      %p105 = scmp.eq.s32.totalorder %s19, 1
      %p106 = scmp.ne.s32.totalorder %s101, %s103
      %p107 = scmp.eq.s32.totalorder %s19, 0
      %p108 = por %p106, %p107
      %p109 = scmp.ne.s32.totalorder %s101, %s103
      %p110 = scmp.eq.s32.totalorder %s24, 1
      %p111 = por %p109, %p110
      %p112 = scmp.ne.s32.totalorder %s103, %s104
      %p113 = scmp.eq.s32.totalorder %s24, 0
      %p114 = por %p112, %p113
      %p115 = scmp.ne.s32.totalorder %s103, %s104
      %p116 = scmp.eq.s32.totalorder %s25, 1
      %p117 = por %p115, %p116
      %p119 = scmp.ne.s32.totalorder %s104, %s118
      %p120 = scmp.eq.s32.totalorder %s25, 0
      %p121 = por %p119, %p120
      %s123 = sadd.s32 %s122, 1
      %p126 = scmp.eq.s32.totalorder %s19, 1
      %p127 = scmp.ne.s32.totalorder %s122, %s124
      %p128 = scmp.eq.s32.totalorder %s19, 0
      %p129 = por %p127, %p128
      %p130 = scmp.ne.s32.totalorder %s122, %s124
      %p131 = scmp.eq.s32.totalorder %s24, 1
      %p132 = por %p130, %p131
      %p133 = scmp.ne.s32.totalorder %s124, %s125
      %p134 = scmp.eq.s32.totalorder %s24, 0
      %p135 = por %p133, %p134
      %p136 = scmp.ne.s32.totalorder %s124, %s125
      %p137 = scmp.eq.s32.totalorder %s25, 1
      %p138 = por %p136, %p137
      %p140 = scmp.ne.s32.totalorder %s125, %s139
      %p141 = scmp.eq.s32.totalorder %s25, 0
      %p142 = por %p140, %p141
      %s143 = ssub.s32 %s26, %s38
      %s144 = ssub.s32 %s27, %s34
      %s145 = sor.u32 %s143, %s144
      %p146 = scmp.eq.s32.totalorder %s145, 0
      %s148 = sadd.s32 %s147, 1
      %s149 = scalar_select %p146, %s147, %s148
      %p152 = pneg %p146
      %p153 = scmp.eq.s32.totalorder %s19, 1
      %p154 = por %p152, %p153
      %p155 = scmp.ne.s32.totalorder %s147, %s150
      %p156 = scmp.eq.s32.totalorder %s19, 0
      %p157 = por %p155, %p156
      %p158 = scmp.ne.s32.totalorder %s147, %s150
      %p159 = scmp.eq.s32.totalorder %s24, 1
      %p160 = por %p158, %p159
      %p161 = scmp.ne.s32.totalorder %s150, %s151
      %p162 = scmp.eq.s32.totalorder %s24, 0
      %p163 = por %p161, %p162
      %p164 = scmp.ne.s32.totalorder %s150, %s151
      %p165 = scmp.eq.s32.totalorder %s25, 1
      %p166 = por %p164, %p165
      %p168 = scmp.ne.s32.totalorder %s151, %s167
      %p169 = scmp.eq.s32.totalorder %s25, 0
      %p170 = por %p168, %p169
      %p171 = scmp.le.s32.totalorder 1, %s19
      %p172 = scmp.lt.s32.totalorder %s19, 3
      %p173 = pnand %p171, %p172
      %p174 = pneg %p173
      // Predicated region
      $region9: #{tpu_custom_call.1} parent=5 // pred_check
        _
      $region10: #{tpu_custom_call.1} parent=5 // pred_check_branch
        %176 = sbr.rel (%p173) target = $region12
      $region11: #{tpu_custom_call.1} parent=5 // pred_region
        %s177 = ssub.s32 %s19, 1
        // Predicated region
        $region13: #{tpu_custom_call.1} parent=11 // pred_check
          %p178 = pneg %p114
        $region14: #{tpu_custom_call.1} parent=11 // pred_check_branch
          %180 = sbr.rel (%p178) target = $region16
        $region15: #{tpu_custom_call.1} parent=11 // pred_region
          _
        $region16: #{tpu_custom_call.1} parent=11 // pred_fallthru
          _
        // Predicated region
        $region17: #{tpu_custom_call.1} parent=11 // pred_check
          %p181 = pneg %p135
        $region18: #{tpu_custom_call.1} parent=11 // pred_check_branch
          %183 = sbr.rel (%p181) target = $region20
        $region19: #{tpu_custom_call.1} parent=11 // pred_region
          _
        $region20: #{tpu_custom_call.1} parent=11 // pred_fallthru
          _
      $region12: #{tpu_custom_call.1} parent=5 // pred_fallthru
        _
      %p184 = scmp.lt.s32.totalorder %s19, 2
      // Predicated region
      $region21: #{tpu_custom_call.1} parent=5 // pred_check
        %p185 = pneg %p184
      $region22: #{tpu_custom_call.1} parent=5 // pred_check_branch
        %187 = sbr.rel (%p185) target = $region24
      $region23: #{tpu_custom_call.1} parent=5 // pred_region
        // Predicated region
        $region25: #{tpu_custom_call.1} parent=23 // pred_check
          %p188 = pneg %p59
        $region26: #{tpu_custom_call.1} parent=23 // pred_check_branch
          %190 = sbr.rel (%p188) target = $region28
        $region27: #{tpu_custom_call.1} parent=23 // pred_region
          %s191 = sand.u32 %s49, 1
          %s192 = scalar_lea.sflag [#allocation3], %s191
          %s193 = sand.u32 %s49, 1
          %s194 = smul.addr %s193, 8
          %s195 = scalar_lea.vmem [#allocation2], %s194
          %s196 = ssub.s32 %s27, 1
          %p197 = scmp.gt.s32.totalorder %s196, 0
          %s198 = scalar_select %p197, %s196, 0
          %s200 = ssub.s32 128, 128
          %201 = vsyncadd %s192, %s200
          %s202 = sadd.s32 %s198, %s26
          %s203 = smul.addr %s202, 128
          %s204 = scalar_lea.hbm %s0, %s203
          %s206 = sshll.u32 %s195, 4
          %s207 = int_to_ptr.vmem [resolvable:$true] %s206
          %209 = dma.hbm_to_vmem [thread:$0]  %s204, 128, %s207, %s192
        $region28: #{tpu_custom_call.1} parent=23 // pred_fallthru
          _
        // Predicated region
        $region29: #{tpu_custom_call.1} parent=23 // pred_check
          %p210 = pneg %p87
        $region30: #{tpu_custom_call.1} parent=23 // pred_check_branch
          %212 = sbr.rel (%p210) target = $region32
        $region31: #{tpu_custom_call.1} parent=23 // pred_region
          %s213 = sand.u32 %s77, 1
          %s214 = scalar_lea.sflag [#allocation6], %s213
          %s215 = sand.u32 %s77, 1
          %s216 = smul.addr %s215, 8
          %s217 = scalar_lea.vmem [#allocation5], %s216
          %s219 = ssub.s32 128, 128
          %220 = vsyncadd %s214, %s219
          %s221 = sadd.s32 %s27, %s26
          %s222 = smul.addr %s221, 128
          %s223 = scalar_lea.hbm %s1, %s222
          %s225 = sshll.u32 %s217, 4
          %s226 = int_to_ptr.vmem [resolvable:$true] %s225
          %228 = dma.hbm_to_vmem [thread:$0]  %s223, 128, %s226, %s214
        $region32: #{tpu_custom_call.1} parent=23 // pred_fallthru
          _
      $region24: #{tpu_custom_call.1} parent=5 // pred_fallthru
        _
      %p229 = scmp.le.s32.totalorder 1, %s19
      %p230 = scmp.lt.s32.totalorder %s19, 3
      %p231 = pnand %p229, %p230
      %p232 = pneg %p231
      // Predicated region
      $region33: #{tpu_custom_call.1} parent=5 // pred_check
        _
      $region34: #{tpu_custom_call.1} parent=5 // pred_check_branch
        %234 = sbr.rel (%p231) target = $region36
      $region35: #{tpu_custom_call.1} parent=5 // pred_region
        %s235 = ssub.s32 %s19, 1
        %s236 = sand.u32 %s52, 1
        %s237 = scalar_lea.sflag [#allocation3], %s236
        %s238 = sand.u32 %s52, 1
        %s239 = smul.addr %s238, 8
        %s240 = scalar_lea.vmem [#allocation2], %s239
        // Predicated region
        $region37: #{tpu_custom_call.1} parent=35 // pred_check
          %p241 = pneg %p65
        $region38: #{tpu_custom_call.1} parent=35 // pred_check_branch
          %243 = sbr.rel (%p241) target = $region40
        $region39: #{tpu_custom_call.1} parent=35 // pred_region
          %244 = dma.done %s237, 128
        $region40: #{tpu_custom_call.1} parent=35 // pred_fallthru
          _
        %s245 = sand.u32 %s80, 1
        %s246 = scalar_lea.sflag [#allocation6], %s245
        %s247 = sand.u32 %s80, 1
        %s248 = smul.addr %s247, 8
        %s249 = scalar_lea.vmem [#allocation5], %s248
        // Predicated region
        $region41: #{tpu_custom_call.1} parent=35 // pred_check
          %p250 = pneg %p93
        $region42: #{tpu_custom_call.1} parent=35 // pred_check_branch
          %252 = sbr.rel (%p250) target = $region44
        $region43: #{tpu_custom_call.1} parent=35 // pred_region
          %253 = dma.done %s246, 128
        $region44: #{tpu_custom_call.1} parent=35 // pred_fallthru
          _
        %s254 = sand.u32 %s52, 1
        %s255 = scalar_lea.sflag [#allocation3], %s254
        %s256 = sand.u32 %s52, 1
        %s257 = smul.addr %s256, 8
        %s258 = scalar_lea.vmem [#allocation2], %s257
        %p259 = pneg %p65
        %p260 = pneg %p62
        %s261 = sand.u32 %s80, 1
        %s262 = scalar_lea.sflag [#allocation6], %s261
        %s263 = sand.u32 %s80, 1
        %s264 = smul.addr %s263, 8
        %s265 = scalar_lea.vmem [#allocation5], %s264
        %p266 = pneg %p93
        %p267 = pneg %p90
        %p268 = pneg %p114
        %p269 = pneg %p111
        %p270 = pneg %p135
        %p271 = pneg %p132
        %p272 = pneg %p163
        %p273 = pneg %p160
        %s274 = sand.u32 %s150, 1
        %s275 = scalar_lea.sflag [#allocation4], %s274
        %s276 = sand.u32 %s150, 1
        %s277 = smul.addr %s276, 4
        %s278 = scalar_lea.vmem [#allocation7], %s277
        %s279 = ssub.s32 %s29, 1
        %p280 = scmp.gt.s32.totalorder %s279, 0
        %s281 = scalar_select %p280, %s279, 0
        %v282 = vld [vmem:[%s240] sm:$0xff]
        %v283 = vld [vmem:[%s249] sm:$0xff]
        %p284 = scmp.eq.s32.totalorder %s29, 0
        %s285 = scalar_select %p284, 1, 0
        %v286 = vstv %s285
        %vm287 = vcmp.eq.s32.totalorder %v286, 1
        %v288 = vsel %vm287, 0.0, %v282
        %291 = vrot.lane.b32.xlu0 %v288, 126
        %v292 = vpop.permute.xlu0 %291
        %293 = vrot.lane.b32.xlu0 %v283, 126
        %v294 = vpop.permute.xlu0 %293
        %vm295 = vcmask 1031168
        %v296 = vsel %vm295, %v292, %v294
        %297 = vrot.lane.b32.xlu0 %v283, 124
        %v298 = vpop.permute.xlu0 %297
        %v299 = vld [vmem:[%s2] sm:$0xf]
        %v300 = vld [vmem:[%s3] sm:$0xf]
        %302 = vset.pattern.permute.xlu0 0
        %303 = vperm.xlu0 %302, %v300
        %v304 = vpop.permute.xlu0 %303
        %306 = vrot.lane.b32.xlu0 %v288, 4
        %v307 = vpop.permute.xlu0 %306
        %308 = vrot.lane.b32.xlu0 %v283, 4
        %v309 = vpop.permute.xlu0 %308
        %310 = vrot.lane.b32.xlu0 %v296, 4
        %v311 = vpop.permute.xlu0 %310
        %312 = vrot.lane.b32.xlu0 %v294, 4
        %v313 = vpop.permute.xlu0 %312
        %314 = vrot.lane.b32.xlu0 %v298, 4
        %v315 = vpop.permute.xlu0 %314
        %vm316 = vcmask 31744
        %v317 = vsel %vm316, %v307, %v309
        %v318 = vsel %vm316, %v311, %v313
        %vm322 = vcmask 195584
        %v324 = vsel %vm322, %v299, 0
        %326 = vmatprep.subr.mxu0 0.0
        %327 = vmatpush1.msra.mxu0 %v317
        %328 = vmatprep.subr.mxu0 0.0
        %329 = vmatpush1.msra.mxu0 %v318
        %330 = vmatprep.subr.mxu0 0.0
        %331 = vmatpush1.msra.mxu0 %v315
        %332 = vmatprep.subr.mxu0 0.0
        %333 = vmatpush1.msra.mxu0 0.0
        %334 = vmatprep.subr.mxu0 0.0
        %335 = vmatpush1.msra.mxu0 0.0
        %336 = vmatprep.subr.mxu0 0.0
        %337 = vmatpush1.msra.mxu0 0.0
        %338 = vmatprep.subr.mxu0 0.0
        %339 = vmatpush1.msra.mxu0 0.0
        %340 = vmatprep.subr.mxu0 0.0
        %341 = vmatpush1.msra.mxu0 0.0
        %342 = vmatprep.subr.mxu0 0.0
        %343 = vmatpush1.msra.mxu0 0.0
        %344 = vmatprep.subr.mxu0 0.0
        %345 = vmatpush1.msra.mxu0 0.0
        %346 = vmatprep.subr.mxu0 0.0
        %347 = vmatpush1.msra.mxu0 0.0
        %348 = vmatprep.subr.mxu0 0.0
        %349 = vmatpush1.msra.mxu0 0.0
        %350 = vmatprep.subr.mxu0 0.0
        %351 = vmatpush1.msra.mxu0 0.0
        %352 = vmatprep.subr.mxu0 0.0
        %353 = vmatpush1.msra.mxu0 0.0
        %354 = vmatprep.subr.mxu0 0.0
        %355 = vmatpush1.msra.mxu0 0.0
        %356 = vmatprep.subr.mxu0 0.0
        %357 = vmatpush1.msra.mxu0 0.0
        %358 = vmatprep.subr.mxu0 0.0
        %359 = vmatpush1.msra.mxu0 0.0
        %360 = vmatprep.subr.mxu0 0.0
        %361 = vmatpush1.msra.mxu0 0.0
        %362 = vmatprep.subr.mxu0 0.0
        %363 = vmatpush1.msra.mxu0 0.0
        %364 = vmatprep.subr.mxu0 0.0
        %365 = vmatpush1.msra.mxu0 0.0
        %366 = vmatprep.subr.mxu0 0.0
        %367 = vmatpush1.msra.mxu0 0.0
        %368 = vmatprep.subr.mxu0 0.0
        %369 = vmatpush1.msra.mxu0 0.0
        %370 = vmatprep.subr.mxu0 0.0
        %371 = vmatpush1.msra.mxu0 0.0
        %372 = vmatprep.subr.mxu0 0.0
        %373 = vmatpush1.msra.mxu0 0.0
        %374 = vmatprep.subr.mxu0 0.0
        %375 = vmatpush1.msra.mxu0 0.0
        %376 = vmatprep.subr.mxu0 0.0
        %377 = vmatpush1.msra.mxu0 0.0
        %378 = vmatprep.subr.mxu0 0.0
        %379 = vmatpush1.msra.mxu0 0.0
        %380 = vmatprep.subr.mxu0 0.0
        %381 = vmatpush1.msra.mxu0 0.0
        %382 = vmatprep.subr.mxu0 0.0
        %383 = vmatpush1.msra.mxu0 0.0
        %384 = vmatprep.subr.mxu0 0.0
        %385 = vmatpush1.msra.mxu0 0.0
        %386 = vmatprep.subr.mxu0 0.0
        %387 = vmatpush1.msra.mxu0 0.0
        %388 = vmatprep.subr.mxu0 0.0
        %389 = vmatpush1.msra.mxu0 0.0
        %390 = vmatprep.mubr.f32.mxu0 0.0
        %391 = vmatmul.mubr.f32.gmra.mrb[0].mxu0 %v324
        %v392 = vpop.f32.mrb[0].mxu0
        %v393 = vadd.f32 %v304, %v392
        %v394 = vpop.f32.mrb[0].mxu0
        %395 = vdwg.mxu0
        %396 = vst [vmem:[%s278] sm:$0xf] %v393
        %s397 = sand.u32 %s150, 1
        %s398 = scalar_lea.sflag [#allocation4], %s397
        %s399 = sand.u32 %s150, 1
        %s400 = smul.addr %s399, 4
        %s401 = scalar_lea.vmem [#allocation7], %s400
        // Predicated region
        $region45: #{tpu_custom_call.1} parent=35 // pred_check
          %p402 = pneg %p160
        $region46: #{tpu_custom_call.1} parent=35 // pred_check_branch
          %404 = sbr.rel (%p402) target = $region48
        $region47: #{tpu_custom_call.1} parent=35 // pred_region
          %s406 = ssub.s32 64, 64
          %407 = vsyncadd %s398, %s406
          %s408 = sadd.s32 %s29, %s28
          %s409 = smul.addr %s408, 64
          %s410 = scalar_lea.hbm %s4, %s409
          %s412 = sshll.u32 %s401, 4
          %s413 = int_to_ptr.vmem [resolvable:$true] %s412
          %415 = dma.vmem_to_hbm [thread:$0]  %s413, 64, %s410, %s398
        $region48: #{tpu_custom_call.1} parent=35 // pred_fallthru
          _
      $region36: #{tpu_custom_call.1} parent=5 // pred_fallthru
        _
      %p416 = scmp.le.s32.totalorder 2, %s19
      // Predicated region
      $region49: #{tpu_custom_call.1} parent=5 // pred_check
        %p417 = pneg %p416
      $region50: #{tpu_custom_call.1} parent=5 // pred_check_branch
        %419 = sbr.rel (%p417) target = $region52
      $region51: #{tpu_custom_call.1} parent=5 // pred_region
        %s420 = ssub.s32 %s19, 2
        // Predicated region
        $region53: #{tpu_custom_call.1} parent=51 // pred_check
          %p421 = pneg %p166
        $region54: #{tpu_custom_call.1} parent=51 // pred_check_branch
          %423 = sbr.rel (%p421) target = $region56
        $region55: #{tpu_custom_call.1} parent=51 // pred_region
          %s424 = sand.u32 %s151, 1
          %s425 = scalar_lea.sflag [#allocation4], %s424
          %s426 = sand.u32 %s151, 1
          %s427 = smul.addr %s426, 4
          %s428 = scalar_lea.vmem [#allocation7], %s427
          %429 = dma.done %s425, 64
        $region56: #{tpu_custom_call.1} parent=51 // pred_fallthru
          _
      $region52: #{tpu_custom_call.1} parent=5 // pred_fallthru
        _
    $region6: #{tpu_custom_call.1} parent=1 // loop_footer
      %s23 = sadd.s32 1, %s19
    $region7: #{tpu_custom_call.1} parent=1 // loop_footer_branch
      %18 = sbr.rel target = $region3
    $region8: #{tpu_custom_call.1} parent=1 // loop_exit
      _
    %430 = vsyncpa [#allocation3], 1
    %s431 = scalar_lea.sflag [#allocation3], 1
    %432 = vsyncpa %s431, 1
    %433 = vsyncpa [#allocation6], 1
    %s434 = scalar_lea.sflag [#allocation6], 1
    %435 = vsyncpa %s434, 1
    %436 = vsyncpa [#allocation4], 1
    %s437 = scalar_lea.sflag [#allocation4], 1
    %438 = vsyncpa %s437, 1

</llo_original>
